<compile_context>
chip_gen: v7x
topology: tpu7x:2x2x1
jax: 0.10.0
libtpu: 0.0.40
codegen_flags: <defaults>
</compile_context>

<pallas_src>
import functools
import math

import jax
import jax.numpy as jnp
from jax import lax
from jax.experimental import pallas as pl
from jax.experimental.pallas import tpu as pltpu


# -----------------------------------------------------------------------------
# Pallas kernel:  out[i] = binom[i] * t^i * (1-t)^(K-1-i)   for lane i = 0..K-1
# -----------------------------------------------------------------------------
def _bezier_kernel(t_ref, binom_ref, out_ref):
    K = out_ref.shape[-1]
    t = t_ref[0]                  # scalar f32 from SMEM
    s = 1.0 - t

    idx = lax.broadcasted_iota(jnp.int32, (1, K), 1)        # lane index i
    t_pow = jnp.ones((1, K), jnp.float32)                    # builds t^i
    s_pow = jnp.ones((1, K), jnp.float32)                    # builds (1-t)^(K-1-i)
    for k in range(K - 1):                                   # K is tiny & static
        t_pow = jnp.where(idx > k, t_pow * t, t_pow)
        s_pow = jnp.where(idx < (K - 1 - k), s_pow * s, s_pow)

    out_ref[...] = binom_ref[...] * t_pow * s_pow


# -----------------------------------------------------------------------------
# Wrapper:  Bezier.forward(t) -> (num_bends,)
# -----------------------------------------------------------------------------
@functools.partial(jax.jit, static_argnames=("num_bends",))
def bezier_forward(t, binom, num_bends):
    K = num_bends
    t_arr = jnp.asarray(t, jnp.float32).reshape(1)            # scalar -> SMEM
    binom2 = jnp.asarray(binom, jnp.float32).reshape(1, K)    # row -> VMEM

    out = pl.pallas_call(
        _bezier_kernel,
        out_shape=jax.ShapeDtypeStruct((1, K), jnp.float32),
        in_specs=[
            pl.BlockSpec(memory_space=pltpu.MemorySpace.SMEM),   # t (scalar)
            pl.BlockSpec(memory_space=pltpu.MemorySpace.VMEM),   # binom (1, K)
        ],
        out_specs=pl.BlockSpec(memory_space=pltpu.MemorySpace.VMEM),
    )(t_arr, binom2)
    return out.reshape(K)


def make_bezier_buffers(num_bends):
    """The same buffers the PyTorch module registers."""
    binom = jnp.asarray(
        [math.comb(num_bends - 1, k) for k in range(num_bends)], jnp.float32)
    rng = jnp.arange(0, num_bends, dtype=jnp.float32)
    rev = jnp.arange(num_bends - 1, -1, -1).astype(jnp.float32)
    return binom, rng, rev


# -----------------------------------------------------------------------------
# Deterministic smoke test + reference check.
# -----------------------------------------------------------------------------
if __name__ == "__main__":
    num_bends = 5
    binom, rng, rev = make_bezier_buffers(num_bends)

    key = jax.random.PRNGKey(0)
    t = jax.random.uniform(key, (), jnp.float32)              # scalar t in [0, 1)

    out = bezier_forward(t, binom, num_bends)
    out = jax.block_until_ready(out)

    # pure-JAX reference of the PyTorch forward
    ref = binom * jnp.power(t, rng) * jnp.power(1.0 - t, rev)

    assert out.shape == (num_bends,) and out.dtype == jnp.float32
    assert bool(jnp.all(jnp.isfinite(out)))
    assert bool(jnp.allclose(out, ref, rtol=1e-6, atol=1e-6))
    # Bernstein basis weights must sum to 1
    assert bool(jnp.allclose(jnp.sum(out), 1.0, rtol=1e-5, atol=1e-5))
    print("KERNEL_OK")
</pallas_src>

<mosaic_0001>
module attributes {stable_mosaic.version = 11 : i64} {
  func.func @_bezier_kernel(%arg0: memref<1xf32, #tpu.memory_space<smem>>, %arg1: memref<1x5xf32, #tpu.memory_space<vmem>>, %arg2: memref<1x5xf32, #tpu.memory_space<vmem>>) attributes {dimension_semantics = [], scalar_prefetch = 0 : i64, scratch_operands = 0 : i64, tpu.core_type = #tpu.core_type<tc>} {
    %c0 = arith.constant 0 : index
    %0 = memref.load %arg0[%c0] : memref<1xf32, #tpu.memory_space<smem>>
    %cst = arith.constant 1.000000e+00 : f32
    %1 = arith.subf %cst, %0 : f32
    %2 = tpu.iota {dimensions = array<i32: 1>} : vector<1x5xi32>
    %cst_0 = arith.constant 1.000000e+00 : f32
    %3 = vector.broadcast %cst_0 : f32 to vector<1x5xf32>
    %cst_1 = arith.constant 1.000000e+00 : f32
    %4 = vector.broadcast %cst_1 : f32 to vector<1x5xf32>
    %c0_i32 = arith.constant 0 : i32
    %5 = vector.broadcast %c0_i32 : i32 to vector<1x5xi32>
    %6 = arith.cmpi sgt, %2, %5 : vector<1x5xi32>
    %7 = vector.broadcast %0 : f32 to vector<1x5xf32>
    %8 = arith.mulf %3, %7 : vector<1x5xf32>
    %9 = arith.select %6, %8, %3 : vector<1x5xi1>, vector<1x5xf32>
    %c4_i32 = arith.constant 4 : i32
    %10 = vector.broadcast %c4_i32 : i32 to vector<1x5xi32>
    %11 = arith.cmpi slt, %2, %10 : vector<1x5xi32>
    %12 = vector.broadcast %1 : f32 to vector<1x5xf32>
    %13 = arith.mulf %4, %12 : vector<1x5xf32>
    %14 = arith.select %11, %13, %4 : vector<1x5xi1>, vector<1x5xf32>
    %c1_i32 = arith.constant 1 : i32
    %15 = vector.broadcast %c1_i32 : i32 to vector<1x5xi32>
    %16 = arith.cmpi sgt, %2, %15 : vector<1x5xi32>
    %17 = vector.broadcast %0 : f32 to vector<1x5xf32>
    %18 = arith.mulf %9, %17 : vector<1x5xf32>
    %19 = arith.select %16, %18, %9 : vector<1x5xi1>, vector<1x5xf32>
    %c3_i32 = arith.constant 3 : i32
    %20 = vector.broadcast %c3_i32 : i32 to vector<1x5xi32>
    %21 = arith.cmpi slt, %2, %20 : vector<1x5xi32>
    %22 = vector.broadcast %1 : f32 to vector<1x5xf32>
    %23 = arith.mulf %14, %22 : vector<1x5xf32>
    %24 = arith.select %21, %23, %14 : vector<1x5xi1>, vector<1x5xf32>
    %c2_i32 = arith.constant 2 : i32
    %25 = vector.broadcast %c2_i32 : i32 to vector<1x5xi32>
    %26 = arith.cmpi sgt, %2, %25 : vector<1x5xi32>
    %27 = vector.broadcast %0 : f32 to vector<1x5xf32>
    %28 = arith.mulf %19, %27 : vector<1x5xf32>
    %29 = arith.select %26, %28, %19 : vector<1x5xi1>, vector<1x5xf32>
    %c2_i32_2 = arith.constant 2 : i32
    %30 = vector.broadcast %c2_i32_2 : i32 to vector<1x5xi32>
    %31 = arith.cmpi slt, %2, %30 : vector<1x5xi32>
    %32 = vector.broadcast %1 : f32 to vector<1x5xf32>
    %33 = arith.mulf %24, %32 : vector<1x5xf32>
    %34 = arith.select %31, %33, %24 : vector<1x5xi1>, vector<1x5xf32>
    %c3_i32_3 = arith.constant 3 : i32
    %35 = vector.broadcast %c3_i32_3 : i32 to vector<1x5xi32>
    %36 = arith.cmpi sgt, %2, %35 : vector<1x5xi32>
    %37 = vector.broadcast %0 : f32 to vector<1x5xf32>
    %38 = arith.mulf %29, %37 : vector<1x5xf32>
    %39 = arith.select %36, %38, %29 : vector<1x5xi1>, vector<1x5xf32>
    %c1_i32_4 = arith.constant 1 : i32
    %40 = vector.broadcast %c1_i32_4 : i32 to vector<1x5xi32>
    %41 = arith.cmpi slt, %2, %40 : vector<1x5xi32>
    %42 = vector.broadcast %1 : f32 to vector<1x5xf32>
    %43 = arith.mulf %34, %42 : vector<1x5xf32>
    %44 = arith.select %41, %43, %34 : vector<1x5xi1>, vector<1x5xf32>
    %c0_5 = arith.constant 0 : index
    %c0_6 = arith.constant 0 : index
    %45 = vector.load %arg1[%c0_5, %c0_6] : memref<1x5xf32, #tpu.memory_space<vmem>>, vector<1x5xf32>
    %46 = arith.mulf %45, %39 : vector<1x5xf32>
    %47 = arith.mulf %46, %44 : vector<1x5xf32>
    %c0_7 = arith.constant 0 : index
    %c0_8 = arith.constant 0 : index
    %48 = vector.load %arg2[%c0_7, %c0_8] : memref<1x5xf32, #tpu.memory_space<vmem>>, vector<1x5xf32>
    tpu.vector_store %arg2[%c0_7, %c0_8], %47 {strides = array<i32>} : memref<1x5xf32, #tpu.memory_space<vmem>>, vector<1x5xf32>,
    return
  }
}

</mosaic_0001>

<llo_original>
// kernel: bezier_forward.1
$region0: #{bezier_forward.1}
  #allocation0 [shape = 'u32[]', space=smem, size = 0x4, offset = 0x4, fixed_abs, tag = 'smem constant byte address 0x4 - core index']
  #allocation1 [shape = 'u32[144,128]{1,0:T(1,128)}', space=vmem, size = 0x12000, scoped, tag = 'internal scratch']
  #allocation2 [shape = 'f32[1]{0:T(128)S(6)}', space=smem, size = 0x200, scoped, tag = 'scoped memory for bezier_forward.1']
  %s0 = inlined_call_operand.<no memory space> [shape: f32[1], index: 0, kind: input, shape index: {}]
  %s1 = inlined_call_operand.vmem [shape: f32[1,5], index: 1, kind: input, shape index: {}]
  %s2 = inlined_call_operand.hbm [shape: f32[1,5], index: 2, kind: output, shape index: {}]
  %s3 = sld [smem:[#allocation0]]
  $region18: #{bezier_forward.1} parent=0
    _
  %s5 = ssub.s32 1, %s3
  %s6 = scalar_select 0, %s5, %s3
  %7 = sst [smem:[#allocation2]] %s0
  $region1: #{bezier_forward.1} parent=0
    #allocation3 [shape = 'u8[512]{0}', space=vmem, size = 0x400, scoped, tag = 'output window, operand 0, single buffered']
    #allocation4 [shape = 's32[1]{0}', space=sflag, size = 0x4, scoped, tag = 'scoped memory for bezier_forward.1']
    %8 = vsyncpa [#allocation4], 0
    // Predicated region
    $region2: #{bezier_forward.1} parent=1 // pred_check
      _
    $region3: #{bezier_forward.1} parent=1 // pred_check_branch
      %10 = sbr.rel (0) target = $region5
    $region4: #{bezier_forward.1} parent=1 // pred_region
      _
    $region5: #{bezier_forward.1} parent=1 // pred_fallthru
      _
    // Predicated region
    $region6: #{bezier_forward.1} parent=1 // pred_check
      _
    $region7: #{bezier_forward.1} parent=1 // pred_check_branch
      %12 = sbr.rel (0) target = $region9
    $region8: #{bezier_forward.1} parent=1 // pred_region
      _
    $region9: #{bezier_forward.1} parent=1 // pred_fallthru
      _
    %s13 = sld [smem:[#allocation2]]
    %s14 = ssub.f32 1.0, %s13
    %v15 = vlaneseq
    %v16 = vand.u32 %v15, 127
    %vm17 = vcmp.gt.s32.totalorder %v16, 0
    %v18 = vstv %s13
    %v19 = vsel %vm17, %v18, 1.0
    %vm20 = vcmp.lt.s32.totalorder %v16, 4
    %v21 = vstv %s14
    %v22 = vsel %vm20, %v21, 1.0
    %vm23 = vcmp.gt.s32.totalorder %v16, 1
    %v24 = vmul.f32 %v19, %v18
    %v25 = vsel %vm23, %v24, %v19
    %vm26 = vcmp.lt.s32.totalorder %v16, 3
    %v27 = vmul.f32 %v22, %v21
    %v28 = vsel %vm26, %v27, %v22
    %vm29 = vcmp.gt.s32.totalorder %v16, 2
    %v30 = vmul.f32 %v25, %v18
    %v31 = vsel %vm29, %v30, %v25
    %vm32 = vcmp.lt.s32.totalorder %v16, 2
    %v33 = vmul.f32 %v28, %v21
    %v34 = vsel %vm32, %v33, %v28
    %vm35 = vcmp.gt.s32.totalorder %v16, 3
    %v36 = vmul.f32 %v31, %v18
    %v37 = vsel %vm35, %v36, %v31
    %vm38 = vcmp.lt.s32.totalorder %v16, 1
    %v39 = vmul.f32 %v34, %v21
    %v40 = vsel %vm38, %v39, %v34
    %v41 = vld [vmem:[%s1] sm:$0x1]
    %v42 = vmul.f32 %v41, %v37
    %v43 = vmul.f32 %v42, %v40
    %vm44 = vcmask 32768
    %45 = vst.msk [vmem:[#allocation3] sm:$0x1] %vm44, %v43
    // Predicated region
    $region10: #{bezier_forward.1} parent=1 // pred_check
      _
    $region11: #{bezier_forward.1} parent=1 // pred_check_branch
      %47 = sbr.rel (0) target = $region13
    $region12: #{bezier_forward.1} parent=1 // pred_region
      %s49 = ssub.s32 16, 16
      %50 = vsyncadd [#allocation4], %s49
      %s52 = sshll.u32 [#allocation3], 4
      %s53 = int_to_ptr.vmem [resolvable:$true] %s52
      %55 = dma.vmem_to_hbm [thread:$0]  %s53, 16, %s2, [#allocation4]
    $region13: #{bezier_forward.1} parent=1 // pred_fallthru
      _
    // Predicated region
    $region14: #{bezier_forward.1} parent=1 // pred_check
      _
    $region15: #{bezier_forward.1} parent=1 // pred_check_branch
      %57 = sbr.rel (0) target = $region17
    $region16: #{bezier_forward.1} parent=1 // pred_region
      %58 = dma.done [#allocation4], 16
    $region17: #{bezier_forward.1} parent=1 // pred_fallthru
      _
    %59 = vsyncpa [#allocation4], 1

</llo_original>
